<compile_context>
chip_gen: v7x
topology: tpu7x:2x2x1
jax: 0.10.0
libtpu: 0.0.40
codegen_flags: <defaults>
</compile_context>

<pallas_src>
import functools

import jax
import jax.numpy as jnp
from jax.experimental import pallas as pl
from jax.experimental.pallas import tpu as pltpu

V_TH = 1.0
DECAY = 0.25
TEMP = 3.0                 # only shapes the surrogate gradient; forward value unaffected
THRESH = 0.5 * V_TH        # (mem / V_th > 0.5)  <=>  (mem > 0.5 * V_th)

_TB_MAX = 8                # max timesteps per grid step
_BLOCK_BYTES_MAX = 4 << 20 # max bytes per (input or output) VMEM block


def _lif_kernel(x_ref, out_ref, mem_ref, *, tb):
    """One grid step == (spatial tile, chunk of `tb` timesteps).

    Membrane potential persists across time chunks in a VMEM scratch.
    """
    tc = pl.program_id(1)

    @pl.when(tc == 0)
    def _():
        mem_ref[...] = jnp.zeros_like(mem_ref)

    # Static unroll over the tb timesteps of this chunk (tb is small, <= 8).
    for i in range(tb):
        mem = mem_ref[...] * DECAY + x_ref[i]        # leaky integration (1 FMA/elem)
        spike = mem > THRESH                         # strict >, as torch.gt
        out_ref[i] = spike.astype(out_ref.dtype)
        mem_ref[...] = jnp.where(spike, 0.0, mem)    # soft reset: mem * (1 - spike)


def _round_up(x, m):
    return (x + m - 1) // m * m


def lif_act(x):
    """x: [T, ...] float array (e.g. [T, B, C, H, W]). Returns float32 spikes, same shape."""
    orig_shape = x.shape
    T = orig_shape[0]
    M = 1
    for d in orig_shape[1:]:
        M *= d

    x_flat = x.reshape(T, M).astype(jnp.float32)

    # ---- time chunking: TB = largest divisor of T that is <= _TB_MAX ----
    if T <= _TB_MAX:
        TB = T
    else:
        TB = max(d for d in range(1, _TB_MAX + 1) if T % d == 0)
    n_chunks = T // TB

    # ---- lane-dense tiling: view [T, M] as [T, S_pad, LANES] ----
    LANES = 512 if M >= 512 else 128
    S = pl.cdiv(M, LANES)
    # Cap the sublane tile so one block stays <= _BLOCK_BYTES_MAX (and <= 1024 rows).
    ts_cap = min(1024, max(8, (_BLOCK_BYTES_MAX // (TB * LANES * 4)) // 8 * 8))
    if S <= ts_cap:
        ts = S                                   # full-extent sublane block (always legal)
        S_pad = S
    else:
        ts = ts_cap                              # multiple of 8
        S_pad = _round_up(S, ts)
    M_pad = S_pad * LANES

    if M_pad != M:
        x_flat = jnp.pad(x_flat, ((0, 0), (0, M_pad - M)))
    x3 = x_flat.reshape(T, S_pad, LANES)

    grid = (S_pad // ts, n_chunks)               # (parallel spatial tiles, sequential time chunks)

    out = pl.pallas_call(
        functools.partial(_lif_kernel, tb=TB),
        out_shape=jax.ShapeDtypeStruct((T, S_pad, LANES), jnp.float32),
        grid_spec=pltpu.PrefetchScalarGridSpec(
            num_scalar_prefetch=0,
            grid=grid,
            in_specs=[pl.BlockSpec((TB, ts, LANES), lambda s, tc: (tc, s, 0))],
            out_specs=pl.BlockSpec((TB, ts, LANES), lambda s, tc: (tc, s, 0)),
            scratch_shapes=[pltpu.VMEM((ts, LANES), jnp.float32)],  # membrane state
        ),
        compiler_params=pltpu.CompilerParams(
            # spatial tiles are independent (megacore-shardable);
            # time carries state -> must stay sequential and fastest-varying.
            dimension_semantics=("parallel", "arbitrary"),
            vmem_limit_bytes=32 * 1024 * 1024,
        ),
    )(x3)

    if M_pad == M:
        return out.reshape(orig_shape)
    return out.reshape(T, M_pad)[:, :M].reshape(orig_shape)


if __name__ == "__main__":
    # small deterministic example: T=4 (default step), B=2, C=4, H=W=16
    T, B, C, H, W = 4, 2, 4, 16, 16
    key = jax.random.PRNGKey(0)
    x = jax.random.normal(key, (T, B, C, H, W), dtype=jnp.float32)

    out = jax.block_until_ready(lif_act(x))

    assert out.shape == (T, B, C, H, W)
    assert out.dtype == jnp.float32
    # spikes are binary
    assert bool(jnp.all((out == 0.0) | (out == 1.0)))

    # pure-JAX reference of the PyTorch forward
    def ref(xx):
        u = jnp.zeros_like(xx[0])
        outs = []
        for t in range(xx.shape[0]):
            u = u * DECAY + xx[t]
            s = (u / V_TH > 0.5).astype(jnp.float32)
            u = u * (1.0 - s)
            outs.append(s)
        return jnp.stack(outs)

    assert bool(jnp.array_equal(out, ref(x)))

    # extra check: a shape where M is not a multiple of the lane width and T > TB_MAX
    T2, B2, C2, H2, W2 = 10, 1, 3, 11, 13
    x2 = jax.random.normal(jax.random.PRNGKey(1), (T2, B2, C2, H2, W2), dtype=jnp.float32)
    out2 = jax.block_until_ready(lif_act(x2))
    assert bool(jnp.array_equal(out2, ref(x2)))

    print("KERNEL_OK")
</pallas_src>

<mosaic_0001>
module attributes {stable_mosaic.version = 11 : i64} {
  func.func @_lif_kernel(%arg0: i32, %arg1: i32, %arg2: memref<4x4x512xf32, #tpu.memory_space<vmem>>, %arg3: memref<4x4x512xf32, #tpu.memory_space<vmem>>, %arg4: memref<4x512xf32, #tpu.memory_space<vmem>>) attributes {dimension_semantics = [#tpu.dimension_semantics<parallel>, #tpu.dimension_semantics<arbitrary>], iteration_bounds = array<i64: 1, 1>, scalar_prefetch = 0 : i64, scratch_operands = 1 : i64, tpu.core_type = #tpu.core_type<tc>, window_params = [{transform_indices = @transform_0, window_bounds = array<i64: 4, 4, 512>}, {transform_indices = @transform_1, window_bounds = array<i64: 4, 4, 512>}]} {
    %c0_i32 = arith.constant 0 : i32
    %0 = arith.cmpi eq, %arg1, %c0_i32 : i32
    %1 = arith.extui %0 : i1 to i32
    %c0_i32_0 = arith.constant 0 : i32
    %2 = arith.cmpi ne, %1, %c0_i32_0 : i32
    scf.if %2 {
      %cst_48 = arith.constant 0.000000e+00 : f32
      %67 = vector.broadcast %cst_48 : f32 to vector<4x512xf32>
      %c0_49 = arith.constant 0 : index
      %c0_50 = arith.constant 0 : index
      %68 = vector.load %arg4[%c0_49, %c0_50] : memref<4x512xf32, #tpu.memory_space<vmem>>, vector<4x512xf32>
      tpu.vector_store %arg4[%c0_49, %c0_50], %67 {strides = array<i32>} : memref<4x512xf32, #tpu.memory_space<vmem>>, vector<4x512xf32>,
    } else {
    }
    %c0 = arith.constant 0 : index
    %c0_1 = arith.constant 0 : index
    %3 = vector.load %arg4[%c0, %c0_1] : memref<4x512xf32, #tpu.memory_space<vmem>>, vector<4x512xf32>
    %cst = arith.constant 2.500000e-01 : f32
    %4 = vector.broadcast %cst : f32 to vector<4x512xf32>
    %5 = arith.mulf %3, %4 : vector<4x512xf32>
    %c0_2 = arith.constant 0 : index
    %c0_3 = arith.constant 0 : index
    %c0_4 = arith.constant 0 : index
    %6 = vector.load %arg2[%c0_2, %c0_3, %c0_4] : memref<4x4x512xf32, #tpu.memory_space<vmem>>, vector<1x4x512xf32>
    %7 = vector.shape_cast %6 : vector<1x4x512xf32> to vector<4x512xf32>
    %8 = arith.addf %5, %7 : vector<4x512xf32>
    %cst_5 = arith.constant 5.000000e-01 : f32
    %9 = vector.broadcast %cst_5 : f32 to vector<4x512xf32>
    %10 = arith.cmpf ogt, %8, %9 : vector<4x512xf32>
    %11 = arith.extui %10 : vector<4x512xi1> to vector<4x512xi32>
    %12 = arith.sitofp %11 : vector<4x512xi32> to vector<4x512xf32>
    %c0_6 = arith.constant 0 : index
    %c0_7 = arith.constant 0 : index
    %c0_8 = arith.constant 0 : index
    %13 = vector.load %arg3[%c0_6, %c0_7, %c0_8] : memref<4x4x512xf32, #tpu.memory_space<vmem>>, vector<1x4x512xf32>
    %14 = vector.shape_cast %13 : vector<1x4x512xf32> to vector<4x512xf32>
    %15 = vector.shape_cast %12 : vector<4x512xf32> to vector<1x4x512xf32>
    tpu.vector_store %arg3[%c0_6, %c0_7, %c0_8], %15 {strides = array<i32>} : memref<4x4x512xf32, #tpu.memory_space<vmem>>, vector<1x4x512xf32>,
    %cst_9 = arith.constant 0.000000e+00 : f32
    %16 = vector.broadcast %cst_9 : f32 to vector<4x512xf32>
    %17 = arith.select %10, %16, %8 : vector<4x512xi1>, vector<4x512xf32>
    %c0_10 = arith.constant 0 : index
    %c0_11 = arith.constant 0 : index
    %18 = vector.load %arg4[%c0_10, %c0_11] : memref<4x512xf32, #tpu.memory_space<vmem>>, vector<4x512xf32>
    tpu.vector_store %arg4[%c0_10, %c0_11], %17 {strides = array<i32>} : memref<4x512xf32, #tpu.memory_space<vmem>>, vector<4x512xf32>,
    %c0_12 = arith.constant 0 : index
    %c0_13 = arith.constant 0 : index
    %19 = vector.load %arg4[%c0_12, %c0_13] : memref<4x512xf32, #tpu.memory_space<vmem>>, vector<4x512xf32>
    %cst_14 = arith.constant 2.500000e-01 : f32
    %20 = vector.broadcast %cst_14 : f32 to vector<4x512xf32>
    %21 = arith.mulf %19, %20 : vector<4x512xf32>
    %c1 = arith.constant 1 : index
    %c0_15 = arith.constant 0 : index
    %c0_16 = arith.constant 0 : index
    %22 = vector.load %arg2[%c1, %c0_15, %c0_16] : memref<4x4x512xf32, #tpu.memory_space<vmem>>, vector<1x4x512xf32>
    %23 = vector.shape_cast %22 : vector<1x4x512xf32> to vector<4x512xf32>
    %24 = arith.addf %21, %23 : vector<4x512xf32>
    %cst_17 = arith.constant 5.000000e-01 : f32
    %25 = vector.broadcast %cst_17 : f32 to vector<4x512xf32>
    %26 = arith.cmpf ogt, %24, %25 : vector<4x512xf32>
    %27 = arith.extui %26 : vector<4x512xi1> to vector<4x512xi32>
    %28 = arith.sitofp %27 : vector<4x512xi32> to vector<4x512xf32>
    %c1_18 = arith.constant 1 : index
    %c0_19 = arith.constant 0 : index
    %c0_20 = arith.constant 0 : index
    %29 = vector.load %arg3[%c1_18, %c0_19, %c0_20] : memref<4x4x512xf32, #tpu.memory_space<vmem>>, vector<1x4x512xf32>
    %30 = vector.shape_cast %29 : vector<1x4x512xf32> to vector<4x512xf32>
    %31 = vector.shape_cast %28 : vector<4x512xf32> to vector<1x4x512xf32>
    tpu.vector_store %arg3[%c1_18, %c0_19, %c0_20], %31 {strides = array<i32>} : memref<4x4x512xf32, #tpu.memory_space<vmem>>, vector<1x4x512xf32>,
    %cst_21 = arith.constant 0.000000e+00 : f32
    %32 = vector.broadcast %cst_21 : f32 to vector<4x512xf32>
    %33 = arith.select %26, %32, %24 : vector<4x512xi1>, vector<4x512xf32>
    %c0_22 = arith.constant 0 : index
    %c0_23 = arith.constant 0 : index
    %34 = vector.load %arg4[%c0_22, %c0_23] : memref<4x512xf32, #tpu.memory_space<vmem>>, vector<4x512xf32>
    tpu.vector_store %arg4[%c0_22, %c0_23], %33 {strides = array<i32>} : memref<4x512xf32, #tpu.memory_space<vmem>>, vector<4x512xf32>,
    %c0_24 = arith.constant 0 : index
    %c0_25 = arith.constant 0 : index
    %35 = vector.load %arg4[%c0_24, %c0_25] : memref<4x512xf32, #tpu.memory_space<vmem>>, vector<4x512xf32>
    %cst_26 = arith.constant 2.500000e-01 : f32
    %36 = vector.broadcast %cst_26 : f32 to vector<4x512xf32>
    %37 = arith.mulf %35, %36 : vector<4x512xf32>
    %c2 = arith.constant 2 : index
    %c0_27 = arith.constant 0 : index
    %c0_28 = arith.constant 0 : index
    %38 = vector.load %arg2[%c2, %c0_27, %c0_28] : memref<4x4x512xf32, #tpu.memory_space<vmem>>, vector<1x4x512xf32>
    %39 = vector.shape_cast %38 : vector<1x4x512xf32> to vector<4x512xf32>
    %40 = arith.addf %37, %39 : vector<4x512xf32>
    %cst_29 = arith.constant 5.000000e-01 : f32
    %41 = vector.broadcast %cst_29 : f32 to vector<4x512xf32>
    %42 = arith.cmpf ogt, %40, %41 : vector<4x512xf32>
    %43 = arith.extui %42 : vector<4x512xi1> to vector<4x512xi32>
    %44 = arith.sitofp %43 : vector<4x512xi32> to vector<4x512xf32>
    %c2_30 = arith.constant 2 : index
    %c0_31 = arith.constant 0 : index
    %c0_32 = arith.constant 0 : index
    %45 = vector.load %arg3[%c2_30, %c0_31, %c0_32] : memref<4x4x512xf32, #tpu.memory_space<vmem>>, vector<1x4x512xf32>
    %46 = vector.shape_cast %45 : vector<1x4x512xf32> to vector<4x512xf32>
    %47 = vector.shape_cast %44 : vector<4x512xf32> to vector<1x4x512xf32>
    tpu.vector_store %arg3[%c2_30, %c0_31, %c0_32], %47 {strides = array<i32>} : memref<4x4x512xf32, #tpu.memory_space<vmem>>, vector<1x4x512xf32>,
    %cst_33 = arith.constant 0.000000e+00 : f32
    %48 = vector.broadcast %cst_33 : f32 to vector<4x512xf32>
    %49 = arith.select %42, %48, %40 : vector<4x512xi1>, vector<4x512xf32>
    %c0_34 = arith.constant 0 : index
    %c0_35 = arith.constant 0 : index
    %50 = vector.load %arg4[%c0_34, %c0_35] : memref<4x512xf32, #tpu.memory_space<vmem>>, vector<4x512xf32>
    tpu.vector_store %arg4[%c0_34, %c0_35], %49 {strides = array<i32>} : memref<4x512xf32, #tpu.memory_space<vmem>>, vector<4x512xf32>,
    %c0_36 = arith.constant 0 : index
    %c0_37 = arith.constant 0 : index
    %51 = vector.load %arg4[%c0_36, %c0_37] : memref<4x512xf32, #tpu.memory_space<vmem>>, vector<4x512xf32>
    %cst_38 = arith.constant 2.500000e-01 : f32
    %52 = vector.broadcast %cst_38 : f32 to vector<4x512xf32>
    %53 = arith.mulf %51, %52 : vector<4x512xf32>
    %c3 = arith.constant 3 : index
    %c0_39 = arith.constant 0 : index
    %c0_40 = arith.constant 0 : index
    %54 = vector.load %arg2[%c3, %c0_39, %c0_40] : memref<4x4x512xf32, #tpu.memory_space<vmem>>, vector<1x4x512xf32>
    %55 = vector.shape_cast %54 : vector<1x4x512xf32> to vector<4x512xf32>
    %56 = arith.addf %53, %55 : vector<4x512xf32>
    %cst_41 = arith.constant 5.000000e-01 : f32
    %57 = vector.broadcast %cst_41 : f32 to vector<4x512xf32>
    %58 = arith.cmpf ogt, %56, %57 : vector<4x512xf32>
    %59 = arith.extui %58 : vector<4x512xi1> to vector<4x512xi32>
    %60 = arith.sitofp %59 : vector<4x512xi32> to vector<4x512xf32>
    %c3_42 = arith.constant 3 : index
    %c0_43 = arith.constant 0 : index
    %c0_44 = arith.constant 0 : index
    %61 = vector.load %arg3[%c3_42, %c0_43, %c0_44] : memref<4x4x512xf32, #tpu.memory_space<vmem>>, vector<1x4x512xf32>
    %62 = vector.shape_cast %61 : vector<1x4x512xf32> to vector<4x512xf32>
    %63 = vector.shape_cast %60 : vector<4x512xf32> to vector<1x4x512xf32>
    tpu.vector_store %arg3[%c3_42, %c0_43, %c0_44], %63 {strides = array<i32>} : memref<4x4x512xf32, #tpu.memory_space<vmem>>, vector<1x4x512xf32>,
    %cst_45 = arith.constant 0.000000e+00 : f32
    %64 = vector.broadcast %cst_45 : f32 to vector<4x512xf32>
    %65 = arith.select %58, %64, %56 : vector<4x512xi1>, vector<4x512xf32>
    %c0_46 = arith.constant 0 : index
    %c0_47 = arith.constant 0 : index
    %66 = vector.load %arg4[%c0_46, %c0_47] : memref<4x512xf32, #tpu.memory_space<vmem>>, vector<4x512xf32>
    tpu.vector_store %arg4[%c0_46, %c0_47], %65 {strides = array<i32>} : memref<4x512xf32, #tpu.memory_space<vmem>>, vector<4x512xf32>,
    return
  }
  func.func @transform_0(%arg0: i32, %arg1: i32) -> (i32, i32, i32) {
    %c0_i32 = arith.constant 0 : i32
    %c0_i32_0 = arith.constant 0 : i32
    return %arg1, %arg0, %c0_i32 : i32, i32, i32
  }
  func.func @transform_1(%arg0: i32, %arg1: i32) -> (i32, i32, i32) {
    %c0_i32 = arith.constant 0 : i32
    %c0_i32_0 = arith.constant 0 : i32
    return %arg1, %arg0, %c0_i32 : i32, i32, i32
  }
}

</mosaic_0001>

<llo_original>
// kernel: tpu_custom_call.1
$region0: #{tpu_custom_call.1}
  #allocation0 [shape = 'u32[]', space=smem, size = 0x4, offset = 0x4, fixed_abs, tag = 'smem constant byte address 0x4 - core index']
  #allocation1 [shape = 'u32[144,128]{1,0:T(1,128)}', space=vmem, size = 0x12000, scoped, tag = 'internal scratch']
  #allocation2 [shape = 'f32[4,512]{1,0:T(4,128)}', space=vmem, size = 0x2000, scoped, tag = 'scratch operand']
  %s0 = inlined_call_operand.hbm [shape: f32[4,4,512], index: 0, kind: input, shape index: {}]
  %s1 = inlined_call_operand.hbm [shape: f32[4,4,512], index: 1, kind: output, shape index: {}]
  %s2 = sld [smem:[#allocation0]]
  $region22: #{tpu_custom_call.1} parent=0
    _
  %s4 = ssub.s32 1, %s2
  %s5 = scalar_select 0, %s4, %s2
  $region1: #{tpu_custom_call.1} parent=0
    #allocation3 [shape = 'u8[32768]{0}', space=vmem, size = 0x8000, scoped, tag = 'input window, operand 0, single buffered']
    #allocation4 [shape = 's32[1]{0}', space=sflag, size = 0x4, scoped, tag = 'scoped memory for tpu_custom_call.1']
    #allocation5 [shape = 's32[1]{0}', space=sflag, size = 0x4, scoped, tag = 'scoped memory for tpu_custom_call.1']
    #allocation6 [shape = 'u8[32768]{0}', space=vmem, size = 0x8000, scoped, tag = 'output window, operand 0, single buffered']
    %6 = vsyncpa [#allocation4], 0
    %7 = vsyncpa [#allocation5], 0
    // Predicated region
    $region2: #{tpu_custom_call.1} parent=1 // pred_check
      _
    $region3: #{tpu_custom_call.1} parent=1 // pred_check_branch
      %9 = sbr.rel (0) target = $region5
    $region4: #{tpu_custom_call.1} parent=1 // pred_region
      %s11 = ssub.s32 1024, 1024
      %12 = vsyncadd [#allocation4], %s11
      %s13 = sshll.u32 [#allocation3], 4
      %s14 = int_to_ptr.vmem [resolvable:$true] %s13
      %19 = dma.hbm_to_vmem [thread:$0]  %s0, 1024, %s14, [#allocation4], 256, 256, 16
    $region5: #{tpu_custom_call.1} parent=1 // pred_fallthru
      _
    // Predicated region
    $region6: #{tpu_custom_call.1} parent=1 // pred_check
      _
    $region7: #{tpu_custom_call.1} parent=1 // pred_check_branch
      %21 = sbr.rel (0) target = $region9
    $region8: #{tpu_custom_call.1} parent=1 // pred_region
      %22 = dma.done [#allocation4], 1024
    $region9: #{tpu_custom_call.1} parent=1 // pred_fallthru
      _
    %p23 = scmp.eq.s32.totalorder 0, 0
    // Predicated region
    $region10: #{tpu_custom_call.1} parent=1 // pred_check
      %p24 = pneg %p23
    $region11: #{tpu_custom_call.1} parent=1 // pred_check_branch
      %26 = sbr.rel (%p24) target = $region13
    $region12: #{tpu_custom_call.1} parent=1 // pred_region
      %27 = vst [vmem:[#allocation2] sm:$0xff] 0.0
      %28 = vst [vmem:[#allocation2 + $0x8] sm:$0xff] 0.0
    $region13: #{tpu_custom_call.1} parent=1 // pred_fallthru
      _
    %v29 = vld [vmem:[#allocation2] sm:$0xff]
    %v30 = vld [vmem:[#allocation2 + $0x8] sm:$0xff]
    %v31 = vmul.f32 %v29, 0.25
    %v32 = vmul.f32 %v30, 0.25
    %v33 = vld [vmem:[#allocation3] sm:$0xff]
    %v34 = vld [vmem:[#allocation3 + $0x8] sm:$0xff]
    %v35 = vadd.f32 %v31, %v33
    %v36 = vadd.f32 %v32, %v34
    %vm37 = vcmp.gt.f32.partialorder %v35, 0.5
    %vm38 = vcmp.gt.f32.partialorder %v36, 0.5
    %v39 = vsel %vm37, 1, 0
    %v40 = vsel %vm38, 1, 0
    %v41 = vcvt.s32.f32 %v39
    %v42 = vcvt.s32.f32 %v40
    %43 = vst [vmem:[#allocation6] sm:$0xff] %v41
    %44 = vst [vmem:[#allocation6 + $0x8] sm:$0xff] %v42
    %v45 = vsel %vm37, 0.0, %v35
    %v46 = vsel %vm38, 0.0, %v36
    %47 = vst [vmem:[#allocation2] sm:$0xff] %v45
    %48 = vst [vmem:[#allocation2 + $0x8] sm:$0xff] %v46
    %v49 = vld [vmem:[#allocation2] sm:$0xff]
    %v50 = vld [vmem:[#allocation2 + $0x8] sm:$0xff]
    %v51 = vmul.f32 %v49, 0.25
    %v52 = vmul.f32 %v50, 0.25
    %s53 = scalar_lea.vmem [#allocation3], 16
    %v54 = vld [vmem:[%s53] sm:$0xff]
    %v55 = vld [vmem:[%s53 + $0x8] sm:$0xff]
    %v56 = vadd.f32 %v51, %v54
    %v57 = vadd.f32 %v52, %v55
    %vm58 = vcmp.gt.f32.partialorder %v56, 0.5
    %vm59 = vcmp.gt.f32.partialorder %v57, 0.5
    %v60 = vsel %vm58, 1, 0
    %v61 = vsel %vm59, 1, 0
    %v62 = vcvt.s32.f32 %v60
    %v63 = vcvt.s32.f32 %v61
    %s64 = scalar_lea.vmem [#allocation6], 16
    %65 = vst [vmem:[%s64] sm:$0xff] %v62
    %66 = vst [vmem:[%s64 + $0x8] sm:$0xff] %v63
    %v67 = vsel %vm58, 0.0, %v56
    %v68 = vsel %vm59, 0.0, %v57
    %69 = vst [vmem:[#allocation2] sm:$0xff] %v67
    %70 = vst [vmem:[#allocation2 + $0x8] sm:$0xff] %v68
    %v71 = vld [vmem:[#allocation2] sm:$0xff]
    %v72 = vld [vmem:[#allocation2 + $0x8] sm:$0xff]
    %v73 = vmul.f32 %v71, 0.25
    %v74 = vmul.f32 %v72, 0.25
    %s75 = scalar_lea.vmem [#allocation3], 32
    %v76 = vld [vmem:[%s75] sm:$0xff]
    %v77 = vld [vmem:[%s75 + $0x8] sm:$0xff]
    %v78 = vadd.f32 %v73, %v76
    %v79 = vadd.f32 %v74, %v77
    %vm80 = vcmp.gt.f32.partialorder %v78, 0.5
    %vm81 = vcmp.gt.f32.partialorder %v79, 0.5
    %v82 = vsel %vm80, 1, 0
    %v83 = vsel %vm81, 1, 0
    %v84 = vcvt.s32.f32 %v82
    %v85 = vcvt.s32.f32 %v83
    %s86 = scalar_lea.vmem [#allocation6], 32
    %87 = vst [vmem:[%s86] sm:$0xff] %v84
    %88 = vst [vmem:[%s86 + $0x8] sm:$0xff] %v85
    %v89 = vsel %vm80, 0.0, %v78
    %v90 = vsel %vm81, 0.0, %v79
    %91 = vst [vmem:[#allocation2] sm:$0xff] %v89
    %92 = vst [vmem:[#allocation2 + $0x8] sm:$0xff] %v90
    %v93 = vld [vmem:[#allocation2] sm:$0xff]
    %v94 = vld [vmem:[#allocation2 + $0x8] sm:$0xff]
    %v95 = vmul.f32 %v93, 0.25
    %v96 = vmul.f32 %v94, 0.25
    %s97 = scalar_lea.vmem [#allocation3], 48
    %v98 = vld [vmem:[%s97] sm:$0xff]
    %v99 = vld [vmem:[%s97 + $0x8] sm:$0xff]
    %v100 = vadd.f32 %v95, %v98
    %v101 = vadd.f32 %v96, %v99
    %vm102 = vcmp.gt.f32.partialorder %v100, 0.5
    %vm103 = vcmp.gt.f32.partialorder %v101, 0.5
    %v104 = vsel %vm102, 1, 0
    %v105 = vsel %vm103, 1, 0
    %v106 = vcvt.s32.f32 %v104
    %v107 = vcvt.s32.f32 %v105
    %s108 = scalar_lea.vmem [#allocation6], 48
    %109 = vst [vmem:[%s108] sm:$0xff] %v106
    %110 = vst [vmem:[%s108 + $0x8] sm:$0xff] %v107
    %v111 = vsel %vm102, 0.0, %v100
    %v112 = vsel %vm103, 0.0, %v101
    %113 = vst [vmem:[#allocation2] sm:$0xff] %v111
    %114 = vst [vmem:[#allocation2 + $0x8] sm:$0xff] %v112
    // Predicated region
    $region14: #{tpu_custom_call.1} parent=1 // pred_check
      _
    $region15: #{tpu_custom_call.1} parent=1 // pred_check_branch
      %116 = sbr.rel (0) target = $region17
    $region16: #{tpu_custom_call.1} parent=1 // pred_region
      %s118 = ssub.s32 1024, 1024
      %119 = vsyncadd [#allocation5], %s118
      %s120 = sshll.u32 [#allocation6], 4
      %s121 = int_to_ptr.vmem [resolvable:$true] %s120
      %126 = dma.vmem_to_hbm [thread:$0]  %s121, 1024, %s1, [#allocation5], 256, 256, 16
    $region17: #{tpu_custom_call.1} parent=1 // pred_fallthru
      _
    // Predicated region
    $region18: #{tpu_custom_call.1} parent=1 // pred_check
      _
    $region19: #{tpu_custom_call.1} parent=1 // pred_check_branch
      %128 = sbr.rel (0) target = $region21
    $region20: #{tpu_custom_call.1} parent=1 // pred_region
      %129 = dma.done [#allocation5], 1024
    $region21: #{tpu_custom_call.1} parent=1 // pred_fallthru
      _
    %130 = vsyncpa [#allocation4], 1
    %131 = vsyncpa [#allocation5], 1

</llo_original>
